<compile_context>
chip_gen: v7x
topology: tpu7x:2x2x1
jax: 0.10.0
libtpu: 0.0.40
codegen_flags: <defaults>
</compile_context>

<pallas_src>
import functools

import jax
import jax.numpy as jnp
from jax import lax
from jax.experimental import pallas as pl
from jax.experimental.pallas import tpu as pltpu


def _dropout_mask_apply(y, seed_u32, i, j, *, keep_prob, out_features, tm, tn):
    """Inverted dropout with a tiling-invariant counter-based hash PRNG.

    Mask depends only on (seed, global row, global col), so it is identical for
    any (tm, tn, tk) tiling.  keep_prob is quantized to 24 bits (bias <= 2^-24).
    NOTE: the global index math wraps for B*OUT >= 2^32 (documented limitation).
    """
    # Row offsets on a (tm, 1) iota -> only tm integer multiplies, then broadcast.
    row = (lax.broadcasted_iota(jnp.int32, (tm, 1), 0) + i * tm).astype(jnp.uint32)
    col = (lax.broadcasted_iota(jnp.int32, (1, tn), 1) + j * tn).astype(jnp.uint32)
    idx = row * jnp.uint32(out_features) + col          # (tm, tn) via broadcast

    h = idx ^ seed_u32
    h = (h ^ (h >> 16)) * jnp.uint32(0x7FEB352D)
    h = (h ^ (h >> 15)) * jnp.uint32(0x846CA68B)
    h = h ^ (h >> 16)

    # Top 24 bits fit in a non-negative int32 -> integer-domain compare only.
    u24 = (h >> 8).astype(jnp.int32)
    thresh = jnp.int32(int(round(keep_prob * (1 << 24))))
    keep = u24 < thresh
    return jnp.where(keep, y * jnp.float32(1.0 / keep_prob), 0.0)


def _single_k_kernel(
    seed_ref,            # SMEM scalar prefetch: (1,) int32 dropout seed
    x_ref,               # VMEM (tm, IN)  bf16
    w_ref,               # VMEM (IN, tn)  bf16  (pre-transposed weight)
    b_ref,               # VMEM (1, tn)   f32
    o_ref,               # VMEM (tm, tn)  f32
    *,
    keep_prob: float,
    apply_dropout: bool,
    out_features: int,
    tm: int,
    tn: int,
):
    # Grid indices read at the kernel top level (never inside pl.when bodies).
    j = pl.program_id(0)   # OUT-block index
    i = pl.program_id(1)   # batch-block index

    y = jnp.dot(x_ref[...], w_ref[...], preferred_element_type=jnp.float32)
    y = jnp.maximum(y + b_ref[...], 0.0)                 # bias + ReLU
    if apply_dropout:
        y = _dropout_mask_apply(
            y, seed_ref[0].astype(jnp.uint32), i, j,
            keep_prob=keep_prob, out_features=out_features, tm=tm, tn=tn)
    o_ref[...] = y.astype(o_ref.dtype)


def _multi_k_kernel(
    seed_ref,            # SMEM scalar prefetch: (1,) int32 dropout seed
    x_ref,               # VMEM (tm, tk) bf16
    w_ref,               # VMEM (tk, tn) bf16  (pre-transposed weight)
    b_ref,               # VMEM (1, tn)  f32
    o_ref,               # VMEM (tm, tn) f32
    acc_ref,             # VMEM (tm, tn) f32 scratch accumulator
    *,
    keep_prob: float,
    apply_dropout: bool,
    out_features: int,
    tm: int,
    tn: int,
):
    # Grid indices read once at the top level; pl.when bodies only capture values.
    j = pl.program_id(0)   # OUT-block index
    i = pl.program_id(1)   # batch-block index
    k = pl.program_id(2)   # K-block index (reduction, innermost)
    nk = pl.num_programs(2)

    @pl.when(k == 0)
    def _init():
        # Fold the bias into the accumulator init (the k==0 store happens anyway).
        acc_ref[...] = jnp.broadcast_to(b_ref[...], acc_ref.shape).astype(jnp.float32)

    acc_ref[...] += jnp.dot(x_ref[...], w_ref[...],
                            preferred_element_type=jnp.float32)

    @pl.when(k == nk - 1)
    def _epilogue():
        y = jnp.maximum(acc_ref[...], 0.0)                # ReLU
        if apply_dropout:
            y = _dropout_mask_apply(
                y, seed_ref[0].astype(jnp.uint32), i, j,
                keep_prob=keep_prob, out_features=out_features, tm=tm, tn=tn)
        o_ref[...] = y.astype(o_ref.dtype)


def activated_linear_with_dropout(
    x, weight, bias, *, dropout_p, seed, training=True,
    tm=512, tn=1024, tk=1024, compute_dtype=jnp.bfloat16,
):
    """x: (B, IN) f32; weight: (OUT, IN) f32 (PyTorch layout); bias: (OUT,) f32."""
    B, IN = x.shape
    OUT, IN_w = weight.shape
    assert IN == IN_w and bias.shape == (OUT,)

    tm = min(tm, B)
    tn = min(tn, OUT)
    tk = min(tk, IN)
    # TODO(synk): generalize to shapes that don't divide the tile sizes (edge masking).
    assert B % tm == 0 and OUT % tn == 0 and IN % tk == 0, "tiles must divide dims"

    keep_prob = 1.0 - float(dropout_p)
    apply_dropout = bool(training) and float(dropout_p) > 0.0

    # bf16 operands in HBM; weight pre-transposed once to (IN, OUT) so the MXU
    # contraction is a plain NN matmul with no in-kernel transpose or casts.
    # TODO(synk): in a real model store the parameter pre-transposed in bf16.
    x_c = x.astype(compute_dtype)
    w_t = weight.T.astype(compute_dtype)           # (IN, OUT)
    b2d = bias.reshape(1, OUT).astype(jnp.float32)
    seed_arr = jnp.asarray([seed], dtype=jnp.int32)

    single_k = (tk == IN)

    # VMEM budget: double-buffered x/W/out (+acc if multi-K), with headroom.
    csize = jnp.dtype(compute_dtype).itemsize
    vmem_bytes = 2 * (tm * tk + tk * tn) * csize + 2 * tm * tn * 4 + 2 * tn * 4
    if not single_k:
        vmem_bytes += tm * tn * 4
    vmem_limit = int(min(max(vmem_bytes + (8 << 20), 32 << 20), 96 << 20))

    cost = pl.CostEstimate(
        flops=2 * B * IN * OUT,
        transcendentals=0,
        bytes_accessed=csize * (B * IN + OUT * IN) + 4 * (B * OUT + OUT),
    )

    if single_k:
        kernel = functools.partial(
            _single_k_kernel, keep_prob=keep_prob, apply_dropout=apply_dropout,
            out_features=OUT, tm=tm, tn=tn)
        grid_spec = pltpu.PrefetchScalarGridSpec(
            num_scalar_prefetch=1,
            grid=(OUT // tn, B // tm),          # batch innermost -> W tile stays resident
            in_specs=[
                pl.BlockSpec((tm, tk), lambda j, i, seed: (i, 0)),   # x
                pl.BlockSpec((tk, tn), lambda j, i, seed: (0, j)),   # W^T (IN, OUT)
                pl.BlockSpec((1, tn), lambda j, i, seed: (0, j)),    # bias
            ],
            out_specs=pl.BlockSpec((tm, tn), lambda j, i, seed: (i, j)),
            scratch_shapes=[],
        )
        semantics = ("parallel", "parallel")
    else:
        kernel = functools.partial(
            _multi_k_kernel, keep_prob=keep_prob, apply_dropout=apply_dropout,
            out_features=OUT, tm=tm, tn=tn)
        grid_spec = pltpu.PrefetchScalarGridSpec(
            num_scalar_prefetch=1,
            grid=(OUT // tn, B // tm, IN // tk),
            in_specs=[
                pl.BlockSpec((tm, tk), lambda j, i, k, seed: (i, k)),   # x
                pl.BlockSpec((tk, tn), lambda j, i, k, seed: (k, j)),   # W^T
                pl.BlockSpec((1, tn), lambda j, i, k, seed: (0, j)),    # bias
            ],
            out_specs=pl.BlockSpec((tm, tn), lambda j, i, k, seed: (i, j)),
            scratch_shapes=[pltpu.VMEM((tm, tn), jnp.float32)],
        )
        semantics = ("parallel", "parallel", "arbitrary")

    return pl.pallas_call(
        kernel,
        out_shape=jax.ShapeDtypeStruct((B, OUT), jnp.float32),
        grid_spec=grid_spec,
        compiler_params=pltpu.CompilerParams(
            dimension_semantics=semantics,
            vmem_limit_bytes=vmem_limit,
        ),
        cost_estimate=cost,
    )(seed_arr, x_c, w_t, b2d)


if __name__ == "__main__":
    # Small shapes consistent with the module's forward: (batch, input_size).
    batch, input_size, output_size = 8, 256, 256
    dropout_p = 0.1
    keep_prob = 1.0 - dropout_p

    key = jax.random.PRNGKey(0)
    kx, kw, kb = jax.random.split(key, 3)

    bound = 1.0 / (input_size ** 0.5)
    x = jax.random.normal(kx, (batch, input_size), dtype=jnp.float32)
    weight = jax.random.uniform(kw, (output_size, input_size),
                                minval=-bound, maxval=bound, dtype=jnp.float32)
    bias = jax.random.uniform(kb, (output_size,),
                              minval=-bound, maxval=bound, dtype=jnp.float32)

    # Default tiles clamp to (8, 256, 256) -> single-K fused path (no acc scratch).
    out_eval = activated_linear_with_dropout(
        x, weight, bias, dropout_p=dropout_p, seed=1234, training=False)
    out_train = activated_linear_with_dropout(
        x, weight, bias, dropout_p=dropout_p, seed=1234, training=True)

    # Forced multi-K path (tk=128 -> grid (2, 1, 2)) to exercise the accumulator.
    out_eval_mk = activated_linear_with_dropout(
        x, weight, bias, dropout_p=dropout_p, seed=1234, training=False,
        tm=8, tn=128, tk=128)

    out_eval = jax.block_until_ready(out_eval)
    out_train = jax.block_until_ready(out_train)
    out_eval_mk = jax.block_until_ready(out_eval_mk)

    # Pure-JAX reference (eval mode) with the same bf16 matmul / f32 accumulation.
    ref = jnp.maximum(
        lax.dot_general(x.astype(jnp.bfloat16), weight.astype(jnp.bfloat16),
                        (((1,), (1,)), ((), ())),
                        preferred_element_type=jnp.float32) + bias,
        0.0)

    assert out_eval.shape == (batch, output_size)
    assert out_train.shape == (batch, output_size)
    assert jnp.allclose(out_eval, ref, atol=2e-2, rtol=2e-2), "eval-mode mismatch"
    assert jnp.allclose(out_eval_mk, ref, atol=2e-2, rtol=2e-2), "multi-K mismatch"

    # Training mode: every element must be either dropped (0) or eval/keep_prob.
    scaled = out_eval / keep_prob
    ok = jnp.logical_or(jnp.abs(out_train) < 1e-6,
                        jnp.abs(out_train - scaled) < 2e-2)
    assert bool(jnp.all(ok)), "dropout-mode mismatch"

    print("KERNEL_OK")
</pallas_src>

<mosaic_0001>
module attributes {stable_mosaic.version = 11 : i64} {
  func.func @_single_k_kernel(%arg0: i32, %arg1: i32, %arg2: memref<1xi32, #tpu.memory_space<smem>>, %arg3: memref<8x256xbf16, #tpu.memory_space<vmem>>, %arg4: memref<256x256xbf16, #tpu.memory_space<vmem>>, %arg5: memref<1x256xf32, #tpu.memory_space<vmem>>, %arg6: memref<8x256xf32, #tpu.memory_space<vmem>>) attributes {dimension_semantics = [#tpu.dimension_semantics<parallel>, #tpu.dimension_semantics<parallel>], iteration_bounds = array<i64: 1, 1>, scalar_prefetch = 1 : i64, scratch_operands = 0 : i64, tpu.core_type = #tpu.core_type<tc>, window_params = [{transform_indices = @transform_0, window_bounds = array<i64: 8, 256>}, {transform_indices = @transform_1, window_bounds = array<i64: 256, 256>}, {transform_indices = @transform_2, window_bounds = array<i64: 1, 256>}, {transform_indices = @transform_3, window_bounds = array<i64: 8, 256>}]} {
    %c0 = arith.constant 0 : index
    %c0_0 = arith.constant 0 : index
    %0 = vector.load %arg3[%c0, %c0_0] : memref<8x256xbf16, #tpu.memory_space<vmem>>, vector<8x256xbf16>
    %c0_1 = arith.constant 0 : index
    %c0_2 = arith.constant 0 : index
    %1 = vector.load %arg4[%c0_1, %c0_2] : memref<256x256xbf16, #tpu.memory_space<vmem>>, vector<256x256xbf16>
    %cst = arith.constant dense<0.000000e+00> : vector<8x256xf32>
    %2 = tpu.matmul %0, %1, %cst {dimension_numbers = #tpu.dot_dimension_numbers<[1], [0], [0], [1], [0, 0, 1, 1], [], []>} : vector<8x256xbf16>, vector<256x256xbf16>, vector<8x256xf32> -> vector<8x256xf32>
    %c0_3 = arith.constant 0 : index
    %c0_4 = arith.constant 0 : index
    %3 = vector.load %arg5[%c0_3, %c0_4] : memref<1x256xf32, #tpu.memory_space<vmem>>, vector<1x256xf32>
    %4 = vector.broadcast %3 : vector<1x256xf32> to vector<8x256xf32>
    %5 = arith.addf %2, %4 : vector<8x256xf32>
    %cst_5 = arith.constant 0.000000e+00 : f32
    %6 = vector.broadcast %cst_5 : f32 to vector<8x256xf32>
    %7 = arith.maximumf %5, %6 : vector<8x256xf32>
    %c0_6 = arith.constant 0 : index
    %c0_7 = arith.constant 0 : index
    %8 = vector.load %arg6[%c0_6, %c0_7] : memref<8x256xf32, #tpu.memory_space<vmem>>, vector<8x256xf32>
    tpu.vector_store %arg6[%c0_6, %c0_7], %7 {strides = array<i32>} : memref<8x256xf32, #tpu.memory_space<vmem>>, vector<8x256xf32>,
    return
  }
  func.func @transform_0(%arg0: i32, %arg1: i32, %arg2: memref<1xi32, #tpu.memory_space<smem>>) -> (i32, i32) {
    %c0_i32 = arith.constant 0 : i32
    %c0_i32_0 = arith.constant 0 : i32
    return %arg1, %c0_i32 : i32, i32
  }
  func.func @transform_1(%arg0: i32, %arg1: i32, %arg2: memref<1xi32, #tpu.memory_space<smem>>) -> (i32, i32) {
    %c0_i32 = arith.constant 0 : i32
    %c0_i32_0 = arith.constant 0 : i32
    return %c0_i32, %arg0 : i32, i32
  }
  func.func @transform_2(%arg0: i32, %arg1: i32, %arg2: memref<1xi32, #tpu.memory_space<smem>>) -> (i32, i32) {
    %c0_i32 = arith.constant 0 : i32
    %c0_i32_0 = arith.constant 0 : i32
    return %c0_i32, %arg0 : i32, i32
  }
  func.func @transform_3(%arg0: i32, %arg1: i32, %arg2: memref<1xi32, #tpu.memory_space<smem>>) -> (i32, i32) {
    %c0_i32 = arith.constant 0 : i32
    return %arg1, %arg0 : i32, i32
  }
}

</mosaic_0001>

<llo_original>
// kernel: tpu_custom_call.1
$region0: #{tpu_custom_call.1}
  #allocation0 [shape = 'u32[]', space=smem, size = 0x4, offset = 0x4, fixed_abs, tag = 'smem constant byte address 0x4 - core index']
  #allocation1 [shape = 'u32[144,128]{1,0:T(1,128)}', space=vmem, size = 0x12000, scoped, tag = 'internal scratch']
  #allocation2 [shape = 's32[1]{0}', space=sflag, size = 0x4, scoped, tag = 'scoped memory for tpu_custom_call.1']
  #allocation3 [shape = 's32[1]{0:T(128)S(6)}', space=smem, size = 0x200, scoped, tag = 'prefetched SMEM operand 0']
  %s0 = inlined_call_operand.<no memory space> [shape: s32[1], index: 0, kind: input, shape index: {}]
  %s1 = inlined_call_operand.hbm [shape: bf16[8,256], index: 1, kind: input, shape index: {}]
  %s2 = inlined_call_operand.hbm [shape: bf16[256,256], index: 2, kind: input, shape index: {}]
  %s3 = inlined_call_operand.vmem [shape: f32[1,256], index: 3, kind: input, shape index: {}]
  %s4 = inlined_call_operand.hbm [shape: f32[8,256], index: 4, kind: output, shape index: {}]
  %s5 = sld [smem:[#allocation0]]
  $region30: #{tpu_custom_call.1} parent=0
    _
  %s7 = ssub.s32 1, %s5
  %s8 = scalar_select 0, %s7, %s5
  %9 = sst [smem:[#allocation3]] %s0
  $region1: #{tpu_custom_call.1} parent=0
    #allocation4 [shape = 'u8[4096]{0}', space=vmem, size = 0x1000, scoped, tag = 'input window, operand 1, single buffered']
    #allocation5 [shape = 's32[1]{0}', space=sflag, size = 0x4, scoped, tag = 'scoped memory for tpu_custom_call.1']
    #allocation6 [shape = 's32[1]{0}', space=sflag, size = 0x4, scoped, tag = 'scoped memory for tpu_custom_call.1']
    #allocation7 [shape = 'u8[131072]{0}', space=vmem, size = 0x20000, scoped, tag = 'input window, operand 2, single buffered']
    #allocation8 [shape = 's32[1]{0}', space=sflag, size = 0x4, scoped, tag = 'scoped memory for tpu_custom_call.1']
    #allocation9 [shape = 'u8[8192]{0}', space=vmem, size = 0x2000, scoped, tag = 'output window, operand 0, single buffered']
    %10 = vsyncpa [#allocation5], 0
    %11 = vsyncpa [#allocation8], 0
    %12 = vsyncpa [#allocation6], 0
    // Predicated region
    $region2: #{tpu_custom_call.1} parent=1 // pred_check
      _
    $region3: #{tpu_custom_call.1} parent=1 // pred_check_branch
      %14 = sbr.rel (0) target = $region5
    $region4: #{tpu_custom_call.1} parent=1 // pred_region
      %s16 = ssub.s32 128, 128
      %17 = vsyncadd [#allocation5], %s16
      %s19 = sshll.u32 [#allocation4], 4
      %s20 = int_to_ptr.vmem [resolvable:$true] %s19
      %22 = dma.hbm_to_vmem [thread:$0]  %s1, 128, %s20, [#allocation5]
    $region5: #{tpu_custom_call.1} parent=1 // pred_fallthru
      _
    // Predicated region
    $region6: #{tpu_custom_call.1} parent=1 // pred_check
      _
    $region7: #{tpu_custom_call.1} parent=1 // pred_check_branch
      %24 = sbr.rel (0) target = $region9
    $region8: #{tpu_custom_call.1} parent=1 // pred_region
      %s26 = ssub.s32 4096, 4096
      %27 = vsyncadd [#allocation8], %s26
      %s28 = sshll.u32 [#allocation7], 4
      %s29 = int_to_ptr.vmem [resolvable:$true] %s28
      %34 = dma.hbm_to_vmem [thread:$0]  %s2, 4096, %s29, [#allocation8], 128, 128, 8
    $region9: #{tpu_custom_call.1} parent=1 // pred_fallthru
      _
    // Predicated region
    $region10: #{tpu_custom_call.1} parent=1 // pred_check
      _
    $region11: #{tpu_custom_call.1} parent=1 // pred_check_branch
      %36 = sbr.rel (0) target = $region13
    $region12: #{tpu_custom_call.1} parent=1 // pred_region
      _
    $region13: #{tpu_custom_call.1} parent=1 // pred_fallthru
      _
    // Predicated region
    $region14: #{tpu_custom_call.1} parent=1 // pred_check
      _
    $region15: #{tpu_custom_call.1} parent=1 // pred_check_branch
      %38 = sbr.rel (0) target = $region17
    $region16: #{tpu_custom_call.1} parent=1 // pred_region
      %39 = dma.done [#allocation5], 128
    $region17: #{tpu_custom_call.1} parent=1 // pred_fallthru
      _
    // Predicated region
    $region18: #{tpu_custom_call.1} parent=1 // pred_check
      _
    $region19: #{tpu_custom_call.1} parent=1 // pred_check_branch
      %41 = sbr.rel (0) target = $region21
    $region20: #{tpu_custom_call.1} parent=1 // pred_region
      %42 = dma.done [#allocation8], 4096
    $region21: #{tpu_custom_call.1} parent=1 // pred_fallthru
      _
    %v43 = vld [vmem:[#allocation4] sm:$0xff]
    %v44 = vld [vmem:[#allocation7] sm:$0xff]
    %v45 = vld [vmem:[#allocation7 + $0x8] sm:$0xff]
    %v46 = vld [vmem:[#allocation7 + $0x10] sm:$0xff]
    %v47 = vld [vmem:[#allocation7 + $0x18] sm:$0xff]
    %v48 = vld [vmem:[#allocation7 + $0x20] sm:$0xff]
    %v49 = vld [vmem:[#allocation7 + $0x28] sm:$0xff]
    %v50 = vld [vmem:[#allocation7 + $0x30] sm:$0xff]
    %v51 = vld [vmem:[#allocation7 + $0x38] sm:$0xff]
    %v52 = vld [vmem:[#allocation7 + $0x40] sm:$0xff]
    %v53 = vld [vmem:[#allocation7 + $0x48] sm:$0xff]
    %v54 = vld [vmem:[#allocation7 + $0x50] sm:$0xff]
    %v55 = vld [vmem:[#allocation7 + $0x58] sm:$0xff]
    %v56 = vld [vmem:[#allocation7 + $0x60] sm:$0xff]
    %v57 = vld [vmem:[#allocation7 + $0x68] sm:$0xff]
    %v58 = vld [vmem:[#allocation7 + $0x70] sm:$0xff]
    %v59 = vld [vmem:[#allocation7 + $0x78] sm:$0xff]
    %v60 = vld [vmem:[#allocation7 + $0x80] sm:$0xff]
    %v61 = vld [vmem:[#allocation7 + $0x88] sm:$0xff]
    %v62 = vld [vmem:[#allocation7 + $0x90] sm:$0xff]
    %v63 = vld [vmem:[#allocation7 + $0x98] sm:$0xff]
    %v64 = vld [vmem:[#allocation7 + $0xa0] sm:$0xff]
    %v65 = vld [vmem:[#allocation7 + $0xa8] sm:$0xff]
    %v66 = vld [vmem:[#allocation7 + $0xb0] sm:$0xff]
    %v67 = vld [vmem:[#allocation7 + $0xb8] sm:$0xff]
    %v68 = vld [vmem:[#allocation7 + $0xc0] sm:$0xff]
    %v69 = vld [vmem:[#allocation7 + $0xc8] sm:$0xff]
    %v70 = vld [vmem:[#allocation7 + $0xd0] sm:$0xff]
    %v71 = vld [vmem:[#allocation7 + $0xd8] sm:$0xff]
    %v72 = vld [vmem:[#allocation7 + $0xe0] sm:$0xff]
    %v73 = vld [vmem:[#allocation7 + $0xe8] sm:$0xff]
    %v74 = vld [vmem:[#allocation7 + $0xf0] sm:$0xff]
    %v75 = vld [vmem:[#allocation7 + $0xf8] sm:$0xff]
    %v76 = vld [vmem:[%s3] sm:$0x3]
    %v78 = vlaneseq
    %v79 = vshrl.u32 %v78, 7
    %v80 = vsub.s32 0, %v79
    %v81 = vrot.slane %v76, %v80
    %v82 = vlaneseq
    %v83 = vshrl.u32 %v82, 7
    %v84 = vsub.s32 1, %v83
    %v85 = vrot.slane %v76, %v84
    %v89 = vunpack.c.l.b16 %v43
    %v90 = vunpack.c.h.b16 %v43
    %v91 = vpack.c.b16 %v89, %v89
    %v92 = vpack.c.b16 %v90, %v90
    %v127 = vunpack.c.l.b16 %v44
    %v128 = vunpack.c.h.b16 %v44
    %v129 = vunpack.c.l.b16 %v45
    %v130 = vunpack.c.h.b16 %v45
    %v131 = vunpack.c.l.b16 %v46
    %v132 = vunpack.c.h.b16 %v46
    %v133 = vunpack.c.l.b16 %v47
    %v134 = vunpack.c.h.b16 %v47
    %v135 = vunpack.c.l.b16 %v48
    %v136 = vunpack.c.h.b16 %v48
    %v137 = vunpack.c.l.b16 %v49
    %v138 = vunpack.c.h.b16 %v49
    %v139 = vunpack.c.l.b16 %v50
    %v140 = vunpack.c.h.b16 %v50
    %v141 = vunpack.c.l.b16 %v51
    %v142 = vunpack.c.h.b16 %v51
    %v143 = vunpack.c.l.b16 %v52
    %v144 = vunpack.c.h.b16 %v52
    %v145 = vunpack.c.l.b16 %v53
    %v146 = vunpack.c.h.b16 %v53
    %v147 = vunpack.c.l.b16 %v54
    %v148 = vunpack.c.h.b16 %v54
    %v149 = vunpack.c.l.b16 %v55
    %v150 = vunpack.c.h.b16 %v55
    %v151 = vunpack.c.l.b16 %v56
    %v152 = vunpack.c.h.b16 %v56
    %v153 = vunpack.c.l.b16 %v57
    %v154 = vunpack.c.h.b16 %v57
    %v155 = vunpack.c.l.b16 %v58
    %v156 = vunpack.c.h.b16 %v58
    %v157 = vunpack.c.l.b16 %v59
    %v158 = vunpack.c.h.b16 %v59
    %v159 = vunpack.c.l.b16 %v60
    %v160 = vunpack.c.h.b16 %v60
    %v161 = vunpack.c.l.b16 %v61
    %v162 = vunpack.c.h.b16 %v61
    %v163 = vunpack.c.l.b16 %v62
    %v164 = vunpack.c.h.b16 %v62
    %v165 = vunpack.c.l.b16 %v63
    %v166 = vunpack.c.h.b16 %v63
    %v167 = vunpack.c.l.b16 %v64
    %v168 = vunpack.c.h.b16 %v64
    %v169 = vunpack.c.l.b16 %v65
    %v170 = vunpack.c.h.b16 %v65
    %v171 = vunpack.c.l.b16 %v66
    %v172 = vunpack.c.h.b16 %v66
    %v173 = vunpack.c.l.b16 %v67
    %v174 = vunpack.c.h.b16 %v67
    %v175 = vunpack.c.l.b16 %v68
    %v176 = vunpack.c.h.b16 %v68
    %v177 = vunpack.c.l.b16 %v69
    %v178 = vunpack.c.h.b16 %v69
    %v179 = vunpack.c.l.b16 %v70
    %v180 = vunpack.c.h.b16 %v70
    %v181 = vunpack.c.l.b16 %v71
    %v182 = vunpack.c.h.b16 %v71
    %v183 = vunpack.c.l.b16 %v72
    %v184 = vunpack.c.h.b16 %v72
    %v185 = vunpack.c.l.b16 %v73
    %v186 = vunpack.c.h.b16 %v73
    %v187 = vunpack.c.l.b16 %v74
    %v188 = vunpack.c.h.b16 %v74
    %v189 = vunpack.c.l.b16 %v75
    %v190 = vunpack.c.h.b16 %v75
    %v191 = vpack.c.b16 %v129, %v127
    %v192 = vpack.c.b16 %v130, %v128
    %v193 = vpack.c.b16 %v133, %v131
    %v194 = vpack.c.b16 %v134, %v132
    %v195 = vpack.c.b16 %v137, %v135
    %v196 = vpack.c.b16 %v138, %v136
    %v197 = vpack.c.b16 %v141, %v139
    %v198 = vpack.c.b16 %v142, %v140
    %v199 = vpack.c.b16 %v145, %v143
    %v200 = vpack.c.b16 %v146, %v144
    %v201 = vpack.c.b16 %v149, %v147
    %v202 = vpack.c.b16 %v150, %v148
    %v203 = vpack.c.b16 %v153, %v151
    %v204 = vpack.c.b16 %v154, %v152
    %v205 = vpack.c.b16 %v157, %v155
    %v206 = vpack.c.b16 %v158, %v156
    %v207 = vpack.c.b16 %v161, %v159
    %v208 = vpack.c.b16 %v162, %v160
    %v209 = vpack.c.b16 %v165, %v163
    %v210 = vpack.c.b16 %v166, %v164
    %v211 = vpack.c.b16 %v169, %v167
    %v212 = vpack.c.b16 %v170, %v168
    %v213 = vpack.c.b16 %v173, %v171
    %v214 = vpack.c.b16 %v174, %v172
    %v215 = vpack.c.b16 %v177, %v175
    %v216 = vpack.c.b16 %v178, %v176
    %v217 = vpack.c.b16 %v181, %v179
    %v218 = vpack.c.b16 %v182, %v180
    %v219 = vpack.c.b16 %v185, %v183
    %v220 = vpack.c.b16 %v186, %v184
    %v221 = vpack.c.b16 %v189, %v187
    %v222 = vpack.c.b16 %v190, %v188
    %255 = vmatprep.subr.bf16.mxu0 %v192
    %256 = vmatpush1.bf16.msra.mxu0 %v191
    %257 = vmatprep.subr.bf16.mxu0 %v194
    %258 = vmatpush1.bf16.msra.mxu0 %v193
    %259 = vmatprep.subr.bf16.mxu0 %v196
    %260 = vmatpush1.bf16.msra.mxu0 %v195
    %261 = vmatprep.subr.bf16.mxu0 %v198
    %262 = vmatpush1.bf16.msra.mxu0 %v197
    %263 = vmatprep.subr.bf16.mxu0 %v200
    %264 = vmatpush1.bf16.msra.mxu0 %v199
    %265 = vmatprep.subr.bf16.mxu0 %v202
    %266 = vmatpush1.bf16.msra.mxu0 %v201
    %267 = vmatprep.subr.bf16.mxu0 %v204
    %268 = vmatpush1.bf16.msra.mxu0 %v203
    %269 = vmatprep.subr.bf16.mxu0 %v206
    %270 = vmatpush1.bf16.msra.mxu0 %v205
    %271 = vmatprep.subr.bf16.mxu0 %v208
    %272 = vmatpush1.bf16.msra.mxu0 %v207
    %273 = vmatprep.subr.bf16.mxu0 %v210
    %274 = vmatpush1.bf16.msra.mxu0 %v209
    %275 = vmatprep.subr.bf16.mxu0 %v212
    %276 = vmatpush1.bf16.msra.mxu0 %v211
    %277 = vmatprep.subr.bf16.mxu0 %v214
    %278 = vmatpush1.bf16.msra.mxu0 %v213
    %279 = vmatprep.subr.bf16.mxu0 %v216
    %280 = vmatpush1.bf16.msra.mxu0 %v215
    %281 = vmatprep.subr.bf16.mxu0 %v218
    %282 = vmatpush1.bf16.msra.mxu0 %v217
    %283 = vmatprep.subr.bf16.mxu0 %v220
    %284 = vmatpush1.bf16.msra.mxu0 %v219
    %285 = vmatprep.subr.bf16.mxu0 %v222
    %286 = vmatpush1.bf16.msra.mxu0 %v221
    %287 = vmatprep.mubr.bf16.mxu0 %v92
    %288 = vmatmul.mubr.bf16.gmra.mrb[0].mxu0 %v91
    %v289 = vpop.f32.mrb[0].mxu0
    %v290 = vadd.f32 %v81, %v289
    %v291 = vpop.f32.mrb[0].mxu0
    %v292 = vadd.f32 %v85, %v291
    %v293 = vpop.f32.mrb[0].mxu0
    %v294 = vpop.f32.mrb[0].mxu0
    %295 = vdwg.mxu0
    %v296 = vmax.f32 %v290, 0.0
    %v297 = vmax.f32 %v292, 0.0
    %298 = vst [vmem:[#allocation9] sm:$0xff] %v296
    %299 = vst [vmem:[#allocation9 + $0x8] sm:$0xff] %v297
    // Predicated region
    $region22: #{tpu_custom_call.1} parent=1 // pred_check
      _
    $region23: #{tpu_custom_call.1} parent=1 // pred_check_branch
      %301 = sbr.rel (0) target = $region25
    $region24: #{tpu_custom_call.1} parent=1 // pred_region
      %s303 = ssub.s32 256, 256
      %304 = vsyncadd [#allocation6], %s303
      %s306 = sshll.u32 [#allocation9], 4
      %s307 = int_to_ptr.vmem [resolvable:$true] %s306
      %309 = dma.vmem_to_hbm [thread:$0]  %s307, 256, %s4, [#allocation6]
    $region25: #{tpu_custom_call.1} parent=1 // pred_fallthru
      _
    // Predicated region
    $region26: #{tpu_custom_call.1} parent=1 // pred_check
      _
    $region27: #{tpu_custom_call.1} parent=1 // pred_check_branch
      %311 = sbr.rel (0) target = $region29
    $region28: #{tpu_custom_call.1} parent=1 // pred_region
      %312 = dma.done [#allocation6], 256
    $region29: #{tpu_custom_call.1} parent=1 // pred_fallthru
      _
    %313 = vsyncpa [#allocation5], 1
    %314 = vsyncpa [#allocation8], 1
    %315 = vsyncpa [#allocation6], 1

</llo_original>
